<compile_context>
chip_gen: v6e
topology: v6e:2x2x1
jax: 0.10.0
libtpu: 0.0.40
codegen_flags: <defaults>
</compile_context>

<pallas_src>
import functools

import jax
import jax.numpy as jnp
from jax import lax
from jax.experimental import pallas as pl
from jax.experimental.pallas import tpu as pltpu


def _round_up(x, m):
    return (x + m - 1) // m * m


def _pick_images_per_step(n, cin, cout):
    """Images folded into the sublane axis per grid step.

    Prefers the smallest divisor B of N such that both B*Cin and B*Cout are
    multiples of 8 (legal block rows + full f32 sublane occupancy); falls back
    to B=N (block == full array dims, always legal)."""
    best = None
    for b in range(1, n + 1):
        if n % b:
            continue
        if (b * cin) % 8 == 0 and (b * cout) % 8 == 0:
            best = b
            if b * cin >= 8:          # sublanes full -> stop growing the block
                break
    return best if best is not None else n


def _sepconv_kernel(x_ref, dw_ref, pw_ref, mask_ref, o_ref, xpf_ref, *,
                    h, w, pitch, margin, pad, stride, dilation,
                    kh_sz, kw_sz, hout, wout, b_img, cin, cout,
                    need_mask, use_mxu):
    """Fused depthwise + pointwise conv for B images folded into sublanes.

    x_ref   : (B*Cin, H*W)       lane-dense input slab (row pitch W)
    dw_ref  : (B*Cin, KH*KW)     depthwise filters, pre-tiled across the batch
    pw_ref  : (Cout, Cin)        pointwise filters
    mask_ref: (KW, span)         f32 {0,1} per-kw horizontal-padding masks
    o_ref   : (B*Cout, Wf_pad)   lane-dense flat output block
    xpf_ref : (B*Cin, L)         f32 scratch: vertically padded image at row
                                 pitch `pitch`, with a left margin of `margin`
                                 zeros (borders zeroed once at step 0)
    """
    bcin = b_img * cin
    wf = hout * wout
    span = (hout - 1) * stride * pitch + (wout - 1) * stride + 1
    data_off = margin + pad * pitch         # 128-aligned by construction

    # ---- zero the border / margin / tail of the scratch ONCE ----------------
    # Scratch persists across grid steps; later steps only overwrite the
    # interior data region, so these zeros stay valid.
    @pl.when(pl.program_id(0) == 0)
    def _init():
        xpf_ref[...] = jnp.zeros_like(xpf_ref)

    # ---- interior write: one bulk, lane-aligned store when pitch == W -------
    xv = x_ref[...].astype(jnp.float32)
    if pitch == w:
        xpf_ref[:, data_off:data_off + h * w] = xv
    else:  # rare (padding > "same"): per-row stores, still zero-once borders
        for hh in range(h):
            off = data_off + hh * pitch
            xpf_ref[:, off:off + w] = xv[:, hh * w:(hh + 1) * w]

    # ---- depthwise conv: flat, lane-dense tap accumulation -------------------
    # Tap (kh, kw) is one contiguous (B*Cin, span) slice at a constant flat
    # shift.  Horizontal padding is emulated by zeroing the per-kw edge columns
    # (mask shared across kh, so it is applied once per kw).
    # TODO(synk): per-kh aligned load + pltpu.roll for the kw shifts would cut
    #             vld pressure ~3x once H*W grows; not worth it at 16x16.
    dwm = dw_ref[...].astype(jnp.float32)            # hoisted weight load
    acc = None
    for kw in range(kw_sz):
        part = None
        for kh in range(kh_sz):
            start = margin + kh * dilation * pitch + kw * dilation - pad
            tap = xpf_ref[:, start:start + span]     # (B*Cin, span)
            t = kh * kw_sz + kw
            contrib = tap * dwm[:, t:t + 1]
            part = contrib if part is None else part + contrib
        if need_mask[kw]:
            part = part * mask_ref[kw:kw + 1, :]     # zero horizontal-pad cols
        acc = part if acc is None else acc + part

    # ---- re-pitch to (B*Cin, Hout*Wout) --------------------------------------
    if stride == 1 and wout == pitch:
        out_dw = acc                                 # already in output layout
    else:
        rows = []
        for r in range(hout):
            r0 = r * stride * pitch
            rows.append(lax.slice(acc, (0, r0),
                                  (bcin, r0 + (wout - 1) * stride + 1),
                                  (1, stride)))
        out_dw = jnp.concatenate(rows, axis=1)       # (B*Cin, Hout*Wout)

    # ---- pointwise 1x1 conv, per image in the folded batch -------------------
    pwm = pw_ref[...].astype(jnp.float32)            # (Cout, Cin)
    for b in range(b_img):
        if not use_mxu:
            # VPU broadcast-MAC (f32 on all chips; tiny Cin*Cout would leave the
            # MXU ~1% utilized).
            ob = None
            for ci in range(cin):
                row = out_dw[b * cin + ci:b * cin + ci + 1, :]   # (1, Wf)
                term = row * pwm[:, ci:ci + 1]                   # (Cout, Wf)
                ob = term if ob is None else ob + term
        else:
            blk = out_dw[b * cin:(b + 1) * cin, :]               # (Cin, Wf)
            # TODO(synk): at real Xception-scale Cin/Cout cast to bf16 on
            # v6e/v7x (keep f32 accumulate); keep f32 on v5e (no bf16 VPU).
            ob = jnp.dot(pwm, blk, preferred_element_type=jnp.float32)
        o_ref[b * cout:(b + 1) * cout, 0:wf] = ob.astype(o_ref.dtype)


def separable_conv2d(x_nchw, depthwise_weight, pointwise_weight, *,
                     stride=1, padding=0, dilation=1):
    """SeparableConv2d.forward.  PyTorch layouts:

      x_nchw           : (N, Cin, H, W)
      depthwise_weight : (Cin, 1, KH, KW)    grouped (groups=Cin) conv weight
      pointwise_weight : (Cout, Cin, 1, 1)   1x1 conv weight
    """
    n, cin, h, w = x_nchw.shape
    kh_sz, kw_sz = depthwise_weight.shape[2], depthwise_weight.shape[3]
    cout = pointwise_weight.shape[0]

    hout = (h + 2 * padding - dilation * (kh_sz - 1) - 1) // stride + 1
    wout = (w + 2 * padding - dilation * (kw_sz - 1) - 1) // stride + 1
    wf = hout * wout
    wf_pad = _round_up(wf, 128)              # lane-dense output insurance

    # Scratch geometry: unpadded row pitch (== W normally), left margin chosen
    # so the interior bulk store lands on a 128-aligned lane offset.
    pitch = max(w, (wout - 1) * stride + 1)
    margin = (-(padding * pitch)) % 128
    if margin < padding:
        margin += 128
    span = (hout - 1) * stride * pitch + (wout - 1) * stride + 1
    data_off = margin + padding * pitch
    max_start = margin + (kh_sz - 1) * dilation * pitch + (kw_sz - 1) * dilation - padding
    write_end = data_off + (h - 1) * pitch + w
    l_flat = _round_up(max(write_end, max_start + span), 128)

    # Which kw taps ever read outside the data columns (need a mask)?
    need_mask = tuple(
        (kw * dilation - padding) < 0 or
        (kw * dilation - padding) + (wout - 1) * stride >= w
        for kw in range(kw_sz))

    # Precomputed {0,1} masks over the flat span (tiny, computed once per call).
    col = jnp.arange(span, dtype=jnp.int32) % pitch          # == cc*stride at consumed positions
    mask_arr = jnp.stack(
        [((col + (kw * dilation - padding) >= 0) &
          (col + (kw * dilation - padding) < w)).astype(jnp.float32)
         for kw in range(kw_sz)], axis=0)                    # (KW, span)

    # Fold the batch into the sublane axis (B*Cin rows per step).
    b_img = _pick_images_per_step(n, cin, cout)
    g_steps = n // b_img
    use_mxu = cin * cout > 1024              # tiny Cin*Cout stays on the VPU

    # Free metadata reshapes of contiguous NCHW tensors; weight tiling is tiny.
    x2 = x_nchw.reshape(n * cin, h * w)
    dwt = jnp.tile(depthwise_weight.reshape(cin, kh_sz * kw_sz), (b_img, 1))
    pw2 = pointwise_weight.reshape(cout, cin)

    # VMEM budget from actual buffer math (double-buffered I/O blocks + scratch).
    itemsize = x_nchw.dtype.itemsize
    vmem_needed = (
        2 * (b_img * cin * h * w * itemsize
             + b_img * cin * kh_sz * kw_sz * 4
             + cout * cin * 4
             + kw_sz * span * 4
             + b_img * cout * wf_pad * itemsize)
        + b_img * cin * l_flat * 4)
    vmem_limit = int(max(1 << 20, min(64 << 20, 2 * vmem_needed)))

    kernel = functools.partial(
        _sepconv_kernel,
        h=h, w=w, pitch=pitch, margin=margin, pad=padding,
        stride=stride, dilation=dilation, kh_sz=kh_sz, kw_sz=kw_sz,
        hout=hout, wout=wout, b_img=b_img, cin=cin, cout=cout,
        need_mask=need_mask, use_mxu=use_mxu)

    out_flat = pl.pallas_call(
        kernel,
        out_shape=jax.ShapeDtypeStruct((n * cout, wf_pad), x_nchw.dtype),
        grid_spec=pltpu.PrefetchScalarGridSpec(
            num_scalar_prefetch=0,
            grid=(g_steps,),
            in_specs=[
                pl.BlockSpec((b_img * cin, h * w), lambda g: (g, 0)),
                pl.BlockSpec((b_img * cin, kh_sz * kw_sz), lambda g: (0, 0)),
                pl.BlockSpec((cout, cin), lambda g: (0, 0)),
                pl.BlockSpec((kw_sz, span), lambda g: (0, 0)),
            ],
            out_specs=pl.BlockSpec((b_img * cout, wf_pad), lambda g: (g, 0)),
            scratch_shapes=[pltpu.VMEM((b_img * cin, l_flat), jnp.float32)],
        ),
        # The zero-once scratch makes the grid axis carried state -> "arbitrary".
        compiler_params=pltpu.CompilerParams(
            dimension_semantics=("arbitrary",),
            vmem_limit_bytes=vmem_limit),
    )(x2, dwt, pw2, mask_arr)

    # Metadata-only slice+reshape back to NCHW (slice is a no-op when wf==wf_pad).
    return out_flat[:, :wf].reshape(n, cout, hout, wout)


def _reference(x_nchw, dw, pw, *, stride, padding, dilation):
    """Pure-JAX reference (lax.conv), same NCHW/OIHW layouts as torch."""
    cin = x_nchw.shape[1]
    y = lax.conv_general_dilated(
        x_nchw, dw,
        window_strides=(stride, stride),
        padding=((padding, padding), (padding, padding)),
        rhs_dilation=(dilation, dilation),
        dimension_numbers=("NCHW", "OIHW", "NCHW"),
        feature_group_count=cin)
    return lax.conv_general_dilated(
        y, pw,
        window_strides=(1, 1),
        padding=((0, 0), (0, 0)),
        dimension_numbers=("NCHW", "OIHW", "NCHW"))


if __name__ == "__main__":
    # SeparableConv2d(in_channels=4, out_channels=8, kernel_size=3,
    #                 stride=1, padding=1, dilation=1, bias=False)
    in_channels, out_channels = 4, 8
    kernel_size, stride, padding, dilation = 3, 1, 1, 1
    batch, H, W = 2, 16, 16

    key = jax.random.PRNGKey(0)
    kx, kdw, kpw = jax.random.split(key, 3)

    x = jax.random.normal(kx, (batch, in_channels, H, W), dtype=jnp.float32)
    dw = jax.random.normal(
        kdw, (in_channels, 1, kernel_size, kernel_size), dtype=jnp.float32) * 0.1
    pw = jax.random.normal(
        kpw, (out_channels, in_channels, 1, 1), dtype=jnp.float32) * 0.1

    out = separable_conv2d(x, dw, pw, stride=stride, padding=padding,
                           dilation=dilation)
    out = jax.block_until_ready(out)

    ref = _reference(x, dw, pw, stride=stride, padding=padding,
                     dilation=dilation)
    assert out.shape == (batch, out_channels, H, W), out.shape
    assert jnp.allclose(out, ref, atol=1e-4, rtol=1e-4), "mismatch vs reference"

    print("KERNEL_OK")
</pallas_src>

<mosaic_0001>
module attributes {stable_mosaic.version = 11 : i64} {
  func.func @_sepconv_kernel(%arg0: i32, %arg1: memref<8x256xf32, #tpu.memory_space<vmem>>, %arg2: memref<8x9xf32, #tpu.memory_space<vmem>>, %arg3: memref<8x4xf32, #tpu.memory_space<vmem>>, %arg4: memref<3x256xf32, #tpu.memory_space<vmem>>, %arg5: memref<16x256xf32, #tpu.memory_space<vmem>>, %arg6: memref<8x512xf32, #tpu.memory_space<vmem>>) attributes {dimension_semantics = [#tpu.dimension_semantics<arbitrary>], iteration_bounds = array<i64: 1>, scalar_prefetch = 0 : i64, scratch_operands = 1 : i64, tpu.core_type = #tpu.core_type<tc>, window_params = [{transform_indices = @transform_0, window_bounds = array<i64: 8, 256>}, {pipeline_mode = #tpu.pipeline_mode<synchronous>, transform_indices = @transform_1, window_bounds = array<i64: 8, 9>}, {pipeline_mode = #tpu.pipeline_mode<synchronous>, transform_indices = @transform_2, window_bounds = array<i64: 8, 4>}, {pipeline_mode = #tpu.pipeline_mode<synchronous>, transform_indices = @transform_3, window_bounds = array<i64: 3, 256>}, {transform_indices = @transform_4, window_bounds = array<i64: 16, 256>}]} {
    %c0_i32 = arith.constant 0 : i32
    %0 = arith.cmpi eq, %arg0, %c0_i32 : i32
    %1 = arith.extui %0 : i1 to i32
    %c0_i32_0 = arith.constant 0 : i32
    %2 = arith.cmpi ne, %1, %c0_i32_0 : i32
    scf.if %2 {
      %cst = arith.constant 0.000000e+00 : f32
      %105 = vector.broadcast %cst : f32 to vector<8x512xf32>
      %c0_23 = arith.constant 0 : index
      %c0_24 = arith.constant 0 : index
      %106 = vector.load %arg6[%c0_23, %c0_24] : memref<8x512xf32, #tpu.memory_space<vmem>>, vector<8x512xf32>
      tpu.vector_store %arg6[%c0_23, %c0_24], %105 {strides = array<i32>} : memref<8x512xf32, #tpu.memory_space<vmem>>, vector<8x512xf32>,
    } else {
    }
    %c0 = arith.constant 0 : index
    %c0_1 = arith.constant 0 : index
    %3 = vector.load %arg1[%c0, %c0_1] : memref<8x256xf32, #tpu.memory_space<vmem>>, vector<8x256xf32>
    %c0_2 = arith.constant 0 : index
    %c128 = arith.constant 128 : index
    %4 = vector.load %arg6[%c0_2, %c128] : memref<8x512xf32, #tpu.memory_space<vmem>>, vector<8x256xf32>
    tpu.vector_store %arg6[%c0_2, %c128], %3 {strides = array<i32>} : memref<8x512xf32, #tpu.memory_space<vmem>>, vector<8x256xf32>,
    %c0_3 = arith.constant 0 : index
    %c0_4 = arith.constant 0 : index
    %5 = vector.load %arg2[%c0_3, %c0_4] : memref<8x9xf32, #tpu.memory_space<vmem>>, vector<8x9xf32>
    %c0_5 = arith.constant 0 : index
    %c111 = arith.constant 111 : index
    %6 = vector.load %arg6[%c0_5, %c111] : memref<8x512xf32, #tpu.memory_space<vmem>>, vector<8x256xf32>
    %7 = vector.extract_strided_slice %5 {offsets = [0, 0], sizes = [8, 1], strides = [1, 1]} : vector<8x9xf32> to vector<8x1xf32>
    %8 = vector.broadcast %7 : vector<8x1xf32> to vector<8x256xf32>
    %9 = arith.mulf %6, %8 : vector<8x256xf32>
    %c0_6 = arith.constant 0 : index
    %c127 = arith.constant 127 : index
    %10 = vector.load %arg6[%c0_6, %c127] : memref<8x512xf32, #tpu.memory_space<vmem>>, vector<8x256xf32>
    %11 = vector.extract_strided_slice %5 {offsets = [0, 3], sizes = [8, 1], strides = [1, 1]} : vector<8x9xf32> to vector<8x1xf32>
    %12 = vector.broadcast %11 : vector<8x1xf32> to vector<8x256xf32>
    %13 = arith.mulf %10, %12 : vector<8x256xf32>
    %14 = arith.addf %9, %13 : vector<8x256xf32>
    %c0_7 = arith.constant 0 : index
    %c143 = arith.constant 143 : index
    %15 = vector.load %arg6[%c0_7, %c143] : memref<8x512xf32, #tpu.memory_space<vmem>>, vector<8x256xf32>
    %16 = vector.extract_strided_slice %5 {offsets = [0, 6], sizes = [8, 1], strides = [1, 1]} : vector<8x9xf32> to vector<8x1xf32>
    %17 = vector.broadcast %16 : vector<8x1xf32> to vector<8x256xf32>
    %18 = arith.mulf %15, %17 : vector<8x256xf32>
    %19 = arith.addf %14, %18 : vector<8x256xf32>
    %c0_8 = arith.constant 0 : index
    %c0_9 = arith.constant 0 : index
    %20 = vector.load %arg4[%c0_8, %c0_9] : memref<3x256xf32, #tpu.memory_space<vmem>>, vector<1x256xf32>
    %21 = vector.broadcast %20 : vector<1x256xf32> to vector<8x256xf32>
    %22 = arith.mulf %19, %21 : vector<8x256xf32>
    %c0_10 = arith.constant 0 : index
    %c112 = arith.constant 112 : index
    %23 = vector.load %arg6[%c0_10, %c112] : memref<8x512xf32, #tpu.memory_space<vmem>>, vector<8x256xf32>
    %24 = vector.extract_strided_slice %5 {offsets = [0, 1], sizes = [8, 1], strides = [1, 1]} : vector<8x9xf32> to vector<8x1xf32>
    %25 = vector.broadcast %24 : vector<8x1xf32> to vector<8x256xf32>
    %26 = arith.mulf %23, %25 : vector<8x256xf32>
    %c0_11 = arith.constant 0 : index
    %c128_12 = arith.constant 128 : index
    %27 = vector.load %arg6[%c0_11, %c128_12] : memref<8x512xf32, #tpu.memory_space<vmem>>, vector<8x256xf32>
    %28 = vector.extract_strided_slice %5 {offsets = [0, 4], sizes = [8, 1], strides = [1, 1]} : vector<8x9xf32> to vector<8x1xf32>
    %29 = vector.broadcast %28 : vector<8x1xf32> to vector<8x256xf32>
    %30 = arith.mulf %27, %29 : vector<8x256xf32>
    %31 = arith.addf %26, %30 : vector<8x256xf32>
    %c0_13 = arith.constant 0 : index
    %c144 = arith.constant 144 : index
    %32 = vector.load %arg6[%c0_13, %c144] : memref<8x512xf32, #tpu.memory_space<vmem>>, vector<8x256xf32>
    %33 = vector.extract_strided_slice %5 {offsets = [0, 7], sizes = [8, 1], strides = [1, 1]} : vector<8x9xf32> to vector<8x1xf32>
    %34 = vector.broadcast %33 : vector<8x1xf32> to vector<8x256xf32>
    %35 = arith.mulf %32, %34 : vector<8x256xf32>
    %36 = arith.addf %31, %35 : vector<8x256xf32>
    %37 = arith.addf %22, %36 : vector<8x256xf32>
    %c0_14 = arith.constant 0 : index
    %c113 = arith.constant 113 : index
    %38 = vector.load %arg6[%c0_14, %c113] : memref<8x512xf32, #tpu.memory_space<vmem>>, vector<8x256xf32>
    %39 = vector.extract_strided_slice %5 {offsets = [0, 2], sizes = [8, 1], strides = [1, 1]} : vector<8x9xf32> to vector<8x1xf32>
    %40 = vector.broadcast %39 : vector<8x1xf32> to vector<8x256xf32>
    %41 = arith.mulf %38, %40 : vector<8x256xf32>
    %c0_15 = arith.constant 0 : index
    %c129 = arith.constant 129 : index
    %42 = vector.load %arg6[%c0_15, %c129] : memref<8x512xf32, #tpu.memory_space<vmem>>, vector<8x256xf32>
    %43 = vector.extract_strided_slice %5 {offsets = [0, 5], sizes = [8, 1], strides = [1, 1]} : vector<8x9xf32> to vector<8x1xf32>
    %44 = vector.broadcast %43 : vector<8x1xf32> to vector<8x256xf32>
    %45 = arith.mulf %42, %44 : vector<8x256xf32>
    %46 = arith.addf %41, %45 : vector<8x256xf32>
    %c0_16 = arith.constant 0 : index
    %c145 = arith.constant 145 : index
    %47 = vector.load %arg6[%c0_16, %c145] : memref<8x512xf32, #tpu.memory_space<vmem>>, vector<8x256xf32>
    %48 = vector.extract_strided_slice %5 {offsets = [0, 8], sizes = [8, 1], strides = [1, 1]} : vector<8x9xf32> to vector<8x1xf32>
    %49 = vector.broadcast %48 : vector<8x1xf32> to vector<8x256xf32>
    %50 = arith.mulf %47, %49 : vector<8x256xf32>
    %51 = arith.addf %46, %50 : vector<8x256xf32>
    %c2 = arith.constant 2 : index
    %c0_17 = arith.constant 0 : index
    %52 = vector.load %arg4[%c2, %c0_17] : memref<3x256xf32, #tpu.memory_space<vmem>>, vector<1x256xf32>
    %53 = vector.broadcast %52 : vector<1x256xf32> to vector<8x256xf32>
    %54 = arith.mulf %51, %53 : vector<8x256xf32>
    %55 = arith.addf %37, %54 : vector<8x256xf32>
    %c0_18 = arith.constant 0 : index
    %c0_19 = arith.constant 0 : index
    %56 = vector.load %arg3[%c0_18, %c0_19] : memref<8x4xf32, #tpu.memory_space<vmem>>, vector<8x4xf32>
    %57 = vector.extract_strided_slice %55 {offsets = [0, 0], sizes = [1, 256], strides = [1, 1]} : vector<8x256xf32> to vector<1x256xf32>
    %58 = vector.extract_strided_slice %56 {offsets = [0, 0], sizes = [8, 1], strides = [1, 1]} : vector<8x4xf32> to vector<8x1xf32>
    %59 = vector.broadcast %57 : vector<1x256xf32> to vector<8x256xf32>
    %60 = vector.broadcast %58 : vector<8x1xf32> to vector<8x256xf32>
    %61 = arith.mulf %59, %60 : vector<8x256xf32>
    %62 = vector.extract_strided_slice %55 {offsets = [1, 0], sizes = [1, 256], strides = [1, 1]} : vector<8x256xf32> to vector<1x256xf32>
    %63 = vector.extract_strided_slice %56 {offsets = [0, 1], sizes = [8, 1], strides = [1, 1]} : vector<8x4xf32> to vector<8x1xf32>
    %64 = vector.broadcast %62 : vector<1x256xf32> to vector<8x256xf32>
    %65 = vector.broadcast %63 : vector<8x1xf32> to vector<8x256xf32>
    %66 = arith.mulf %64, %65 : vector<8x256xf32>
    %67 = arith.addf %61, %66 : vector<8x256xf32>
    %68 = vector.extract_strided_slice %55 {offsets = [2, 0], sizes = [1, 256], strides = [1, 1]} : vector<8x256xf32> to vector<1x256xf32>
    %69 = vector.extract_strided_slice %56 {offsets = [0, 2], sizes = [8, 1], strides = [1, 1]} : vector<8x4xf32> to vector<8x1xf32>
    %70 = vector.broadcast %68 : vector<1x256xf32> to vector<8x256xf32>
    %71 = vector.broadcast %69 : vector<8x1xf32> to vector<8x256xf32>
    %72 = arith.mulf %70, %71 : vector<8x256xf32>
    %73 = arith.addf %67, %72 : vector<8x256xf32>
    %74 = vector.extract_strided_slice %55 {offsets = [3, 0], sizes = [1, 256], strides = [1, 1]} : vector<8x256xf32> to vector<1x256xf32>
    %75 = vector.extract_strided_slice %56 {offsets = [0, 3], sizes = [8, 1], strides = [1, 1]} : vector<8x4xf32> to vector<8x1xf32>
    %76 = vector.broadcast %74 : vector<1x256xf32> to vector<8x256xf32>
    %77 = vector.broadcast %75 : vector<8x1xf32> to vector<8x256xf32>
    %78 = arith.mulf %76, %77 : vector<8x256xf32>
    %79 = arith.addf %73, %78 : vector<8x256xf32>
    %c0_20 = arith.constant 0 : index
    %c0_21 = arith.constant 0 : index
    %80 = vector.load %arg5[%c0_20, %c0_21] : memref<16x256xf32, #tpu.memory_space<vmem>>, vector<8x256xf32>
    tpu.vector_store %arg5[%c0_20, %c0_21], %79 {strides = array<i32>} : memref<16x256xf32, #tpu.memory_space<vmem>>, vector<8x256xf32>,
    %81 = vector.extract_strided_slice %55 {offsets = [4, 0], sizes = [1, 256], strides = [1, 1]} : vector<8x256xf32> to vector<1x256xf32>
    %82 = vector.extract_strided_slice %56 {offsets = [0, 0], sizes = [8, 1], strides = [1, 1]} : vector<8x4xf32> to vector<8x1xf32>
    %83 = vector.broadcast %81 : vector<1x256xf32> to vector<8x256xf32>
    %84 = vector.broadcast %82 : vector<8x1xf32> to vector<8x256xf32>
    %85 = arith.mulf %83, %84 : vector<8x256xf32>
    %86 = vector.extract_strided_slice %55 {offsets = [5, 0], sizes = [1, 256], strides = [1, 1]} : vector<8x256xf32> to vector<1x256xf32>
    %87 = vector.extract_strided_slice %56 {offsets = [0, 1], sizes = [8, 1], strides = [1, 1]} : vector<8x4xf32> to vector<8x1xf32>
    %88 = vector.broadcast %86 : vector<1x256xf32> to vector<8x256xf32>
    %89 = vector.broadcast %87 : vector<8x1xf32> to vector<8x256xf32>
    %90 = arith.mulf %88, %89 : vector<8x256xf32>
    %91 = arith.addf %85, %90 : vector<8x256xf32>
    %92 = vector.extract_strided_slice %55 {offsets = [6, 0], sizes = [1, 256], strides = [1, 1]} : vector<8x256xf32> to vector<1x256xf32>
    %93 = vector.extract_strided_slice %56 {offsets = [0, 2], sizes = [8, 1], strides = [1, 1]} : vector<8x4xf32> to vector<8x1xf32>
    %94 = vector.broadcast %92 : vector<1x256xf32> to vector<8x256xf32>
    %95 = vector.broadcast %93 : vector<8x1xf32> to vector<8x256xf32>
    %96 = arith.mulf %94, %95 : vector<8x256xf32>
    %97 = arith.addf %91, %96 : vector<8x256xf32>
    %98 = vector.extract_strided_slice %55 {offsets = [7, 0], sizes = [1, 256], strides = [1, 1]} : vector<8x256xf32> to vector<1x256xf32>
    %99 = vector.extract_strided_slice %56 {offsets = [0, 3], sizes = [8, 1], strides = [1, 1]} : vector<8x4xf32> to vector<8x1xf32>
    %100 = vector.broadcast %98 : vector<1x256xf32> to vector<8x256xf32>
    %101 = vector.broadcast %99 : vector<8x1xf32> to vector<8x256xf32>
    %102 = arith.mulf %100, %101 : vector<8x256xf32>
    %103 = arith.addf %97, %102 : vector<8x256xf32>
    %c8 = arith.constant 8 : index
    %c0_22 = arith.constant 0 : index
    %104 = vector.load %arg5[%c8, %c0_22] : memref<16x256xf32, #tpu.memory_space<vmem>>, vector<8x256xf32>
    tpu.vector_store %arg5[%c8, %c0_22], %103 {strides = array<i32>} : memref<16x256xf32, #tpu.memory_space<vmem>>, vector<8x256xf32>,
    return
  }
  func.func @transform_0(%arg0: i32) -> (i32, i32) {
    %c0_i32 = arith.constant 0 : i32
    %c0_i32_0 = arith.constant 0 : i32
    return %arg0, %c0_i32 : i32, i32
  }
  func.func @transform_1(%arg0: i32) -> (i32, i32) {
    %c0_i32 = arith.constant 0 : i32
    %c0_i32_0 = arith.constant 0 : i32
    %c0_i32_1 = arith.constant 0 : i32
    return %c0_i32, %c0_i32_0 : i32, i32
  }
  func.func @transform_2(%arg0: i32) -> (i32, i32) {
    %c0_i32 = arith.constant 0 : i32
    %c0_i32_0 = arith.constant 0 : i32
    %c0_i32_1 = arith.constant 0 : i32
    return %c0_i32, %c0_i32_0 : i32, i32
  }
  func.func @transform_3(%arg0: i32) -> (i32, i32) {
    %c0_i32 = arith.constant 0 : i32
    %c0_i32_0 = arith.constant 0 : i32
    %c0_i32_1 = arith.constant 0 : i32
    return %c0_i32, %c0_i32_0 : i32, i32
  }
  func.func @transform_4(%arg0: i32) -> (i32, i32) {
    %c0_i32 = arith.constant 0 : i32
    %c0_i32_0 = arith.constant 0 : i32
    return %arg0, %c0_i32 : i32, i32
  }
}

</mosaic_0001>

<llo_original>
// kernel: tpu_custom_call.1
$region0: #{tpu_custom_call.1}
  #allocation0 [shape = 'u32[]', space=smem, size = 0x4, offset = 0x4, fixed_abs, tag = 'smem constant byte address 0x4 - core index']
  #allocation1 [shape = 'u32[144,128]{1,0:T(1,128)}', space=vmem, size = 0x12000, scoped, tag = 'internal scratch']
  #allocation2 [shape = 'f32[8,512]{1,0:T(8,128)}', space=vmem, size = 0x4000, scoped, tag = 'scratch operand']
  %s0 = inlined_call_operand.hbm [shape: f32[8,256], index: 0, kind: input, shape index: {}]
  %s1 = inlined_call_operand.vmem [shape: f32[8,9], index: 1, kind: input, shape index: {}]
  %s2 = inlined_call_operand.vmem [shape: f32[8,4], index: 2, kind: input, shape index: {}]
  %s3 = inlined_call_operand.vmem [shape: f32[3,256], index: 3, kind: input, shape index: {}]
  %s4 = inlined_call_operand.hbm [shape: f32[16,256], index: 4, kind: output, shape index: {}]
  %s5 = sld [smem:[#allocation0]]
  $region34: #{tpu_custom_call.1} parent=0
    _
  %s7 = ssub.s32 1, %s5
  %s8 = scalar_select 0, %s7, %s5
  $region1: #{tpu_custom_call.1} parent=0
    #allocation3 [shape = 'u8[8192]{0}', space=vmem, size = 0x2000, scoped, tag = 'input window, operand 0, single buffered']
    #allocation4 [shape = 's32[1]{0}', space=sflag, size = 0x4, scoped, tag = 'scoped memory for tpu_custom_call.1']
    #allocation5 [shape = 's32[1]{0}', space=sflag, size = 0x4, scoped, tag = 'scoped memory for tpu_custom_call.1']
    #allocation6 [shape = 'u8[16384]{0}', space=vmem, size = 0x4000, scoped, tag = 'output window, operand 0, single buffered']
    %9 = vsyncpa [#allocation4], 0
    %10 = vsyncpa [#allocation5], 0
    // Predicated region
    $region2: #{tpu_custom_call.1} parent=1 // pred_check
      _
    $region3: #{tpu_custom_call.1} parent=1 // pred_check_branch
      %12 = sbr.rel (0) target = $region5
    $region4: #{tpu_custom_call.1} parent=1 // pred_region
      %s14 = ssub.s32 256, 256
      %15 = vsyncadd [#allocation4], %s14
      %s17 = sshll.u32 [#allocation3], 4
      %s18 = int_to_ptr.vmem [resolvable:$true] %s17
      %20 = dma.hbm_to_vmem [thread:$0]  %s0, 256, %s18, [#allocation4]
    $region5: #{tpu_custom_call.1} parent=1 // pred_fallthru
      _
    // Predicated region
    $region6: #{tpu_custom_call.1} parent=1 // pred_check
      _
    $region7: #{tpu_custom_call.1} parent=1 // pred_check_branch
      %22 = sbr.rel (0) target = $region9
    $region8: #{tpu_custom_call.1} parent=1 // pred_region
      _
    $region9: #{tpu_custom_call.1} parent=1 // pred_fallthru
      _
    // Predicated region
    $region10: #{tpu_custom_call.1} parent=1 // pred_check
      _
    $region11: #{tpu_custom_call.1} parent=1 // pred_check_branch
      %24 = sbr.rel (0) target = $region13
    $region12: #{tpu_custom_call.1} parent=1 // pred_region
      _
    $region13: #{tpu_custom_call.1} parent=1 // pred_fallthru
      _
    // Predicated region
    $region14: #{tpu_custom_call.1} parent=1 // pred_check
      _
    $region15: #{tpu_custom_call.1} parent=1 // pred_check_branch
      %26 = sbr.rel (0) target = $region17
    $region16: #{tpu_custom_call.1} parent=1 // pred_region
      _
    $region17: #{tpu_custom_call.1} parent=1 // pred_fallthru
      _
    // Predicated region
    $region18: #{tpu_custom_call.1} parent=1 // pred_check
      _
    $region19: #{tpu_custom_call.1} parent=1 // pred_check_branch
      %28 = sbr.rel (0) target = $region21
    $region20: #{tpu_custom_call.1} parent=1 // pred_region
      %29 = dma.done [#allocation4], 256
    $region21: #{tpu_custom_call.1} parent=1 // pred_fallthru
      _
    %p30 = scmp.eq.s32.totalorder 0, 0
    // Predicated region
    $region22: #{tpu_custom_call.1} parent=1 // pred_check
      %p31 = pneg %p30
    $region23: #{tpu_custom_call.1} parent=1 // pred_check_branch
      %33 = sbr.rel (%p31) target = $region25
    $region24: #{tpu_custom_call.1} parent=1 // pred_region
      %34 = vst [vmem:[#allocation2] sm:$0xff] 0.0
      %35 = vst [vmem:[#allocation2 + $0x8] sm:$0xff] 0.0
      %36 = vst [vmem:[#allocation2 + $0x10] sm:$0xff] 0.0
      %37 = vst [vmem:[#allocation2 + $0x18] sm:$0xff] 0.0
    $region25: #{tpu_custom_call.1} parent=1 // pred_fallthru
      _
    %v38 = vld [vmem:[#allocation3] sm:$0xff]
    %v39 = vld [vmem:[#allocation3 + $0x8] sm:$0xff]
    %40 = vst [vmem:[#allocation2 + $0x8] sm:$0xff] %v38
    %41 = vst [vmem:[#allocation2 + $0x10] sm:$0xff] %v39
    %v42 = vld [vmem:[%s1] sm:$0xff]
    %v43 = vld [vmem:[#allocation2] sm:$0xff]
    %v44 = vld [vmem:[#allocation2 + $0x8] sm:$0xff]
    %v45 = vld [vmem:[#allocation2 + $0x10] sm:$0xff]
    %47 = vset.pattern.permute.xlu0 0
    %48 = vperm.xlu0 %47, %v42
    %v49 = vpop.permute.xlu0 %48
    %v51 = vmul.f32 %v43, %v49
    %v52 = vmul.f32 %v44, %v49
    %v53 = vmul.f32 %v45, %v49
    %54 = vset.pattern.permute.xlu0 3
    %55 = vperm.xlu0 %54, %v42
    %v56 = vpop.permute.xlu0 %55
    %v58 = vmul.f32 %v43, %v56
    %v59 = vmul.f32 %v44, %v56
    %v60 = vmul.f32 %v45, %v56
    %64 = vrot.lane.b32.xlu0 %v58, 112
    %v65 = vpop.permute.xlu0 %64
    %66 = vrot.lane.b32.xlu0 %v59, 112
    %v67 = vpop.permute.xlu0 %66
    %68 = vrot.lane.b32.xlu0 %v60, 112
    %v69 = vpop.permute.xlu0 %68
    %vm70 = vcmask 916480
    %v71 = vsel %vm70, %v65, %v67
    %v72 = vsel %vm70, %v67, %v69
    %v76 = vadd.f32 %v51, %v71
    %v77 = vadd.f32 %v52, %v72
    %v78 = vadd.f32 %v53, %v69
    %v79 = vld [vmem:[#allocation2 + $0x8] sm:$0xff]
    %v80 = vld [vmem:[#allocation2 + $0x10] sm:$0xff]
    %v81 = vld [vmem:[#allocation2 + $0x18] sm:$0xff]
    %82 = vset.pattern.permute.xlu0 6
    %83 = vperm.xlu0 %82, %v42
    %v84 = vpop.permute.xlu0 %83
    %v86 = vmul.f32 %v79, %v84
    %v87 = vmul.f32 %v80, %v84
    %v88 = vmul.f32 %v81, %v84
    %92 = vrot.lane.b32.xlu0 %v86, 96
    %v93 = vpop.permute.xlu0 %92
    %94 = vrot.lane.b32.xlu0 %v87, 96
    %v95 = vpop.permute.xlu0 %94
    %96 = vrot.lane.b32.xlu0 %v88, 96
    %v97 = vpop.permute.xlu0 %96
    %vm98 = vcmask 785408
    %v99 = vsel %vm98, %v93, %v95
    %v100 = vsel %vm98, %v95, %v97
    %v104 = vadd.f32 %v76, %v93
    %v105 = vadd.f32 %v77, %v99
    %v106 = vadd.f32 %v78, %v100
    %v107 = vld [vmem:[%s3] ss:$4 sm:$0x3]
    %v109 = vlaneseq
    %v110 = vshrl.u32 %v109, 7
    %v111 = vsub.s32 0, %v110
    %v112 = vrot.slane %v107, %v111
    %v113 = vlaneseq
    %v114 = vshrl.u32 %v113, 7
    %v115 = vsub.s32 1, %v114
    %v116 = vrot.slane %v107, %v115
    %117 = vrot.lane.b32.xlu0 %v112, 111
    %v118 = vpop.permute.xlu0 %117
    %119 = vrot.lane.b32.xlu0 %v116, 111
    %v120 = vpop.permute.xlu0 %119
    %vm121 = vcmask 908288
    %v122 = vsel %vm121, %v118, %v120
    %v126 = vmul.f32 %v104, %v118
    %v127 = vmul.f32 %v105, %v122
    %v128 = vmul.f32 %v106, %v120
    %129 = vset.pattern.permute.xlu0 1
    %130 = vperm.xlu0 %129, %v42
    %v131 = vpop.permute.xlu0 %130
    %v133 = vmul.f32 %v43, %v131
    %v134 = vmul.f32 %v44, %v131
    %v135 = vmul.f32 %v45, %v131
    %136 = vset.pattern.permute.xlu0 4
    %137 = vperm.xlu0 %136, %v42
    %v138 = vpop.permute.xlu0 %137
    %v140 = vmul.f32 %v44, %v138
    %v141 = vmul.f32 %v45, %v138
    %144 = vrot.lane.b32.xlu0 %v140, 112
    %v145 = vpop.permute.xlu0 %144
    %146 = vrot.lane.b32.xlu0 %v141, 112
    %v147 = vpop.permute.xlu0 %146
    %v148 = vsel %vm70, %v145, %v147
    %v152 = vadd.f32 %v133, %v145
    %v153 = vadd.f32 %v134, %v148
    %v154 = vadd.f32 %v135, %v147
    %155 = vset.pattern.permute.xlu0 7
    %156 = vperm.xlu0 %155, %v42
    %v157 = vpop.permute.xlu0 %156
    %v159 = vmul.f32 %v79, %v157
    %v160 = vmul.f32 %v80, %v157
    %v161 = vmul.f32 %v81, %v157
    %165 = vrot.lane.b32.xlu0 %v159, 96
    %v166 = vpop.permute.xlu0 %165
    %167 = vrot.lane.b32.xlu0 %v160, 96
    %v168 = vpop.permute.xlu0 %167
    %169 = vrot.lane.b32.xlu0 %v161, 96
    %v170 = vpop.permute.xlu0 %169
    %v171 = vsel %vm98, %v166, %v168
    %v172 = vsel %vm98, %v168, %v170
    %v176 = vadd.f32 %v152, %v166
    %v177 = vadd.f32 %v153, %v171
    %v178 = vadd.f32 %v154, %v172
    %182 = vrot.lane.b32.xlu0 %v176, 127
    %v183 = vpop.permute.xlu0 %182
    %184 = vrot.lane.b32.xlu0 %v177, 127
    %v185 = vpop.permute.xlu0 %184
    %186 = vrot.lane.b32.xlu0 %v178, 127
    %v187 = vpop.permute.xlu0 %186
    %vm188 = vcmask 1039360
    %v189 = vsel %vm188, %v183, %v185
    %v190 = vsel %vm188, %v185, %v187
    %v194 = vadd.f32 %v126, %v189
    %v195 = vadd.f32 %v127, %v190
    %v196 = vadd.f32 %v128, %v187
    %197 = vset.pattern.permute.xlu0 2
    %198 = vperm.xlu0 %197, %v42
    %v199 = vpop.permute.xlu0 %198
    %v201 = vmul.f32 %v43, %v199
    %v202 = vmul.f32 %v44, %v199
    %v203 = vmul.f32 %v45, %v199
    %204 = vset.pattern.permute.xlu0 5
    %205 = vperm.xlu0 %204, %v42
    %v206 = vpop.permute.xlu0 %205
    %v208 = vmul.f32 %v79, %v206
    %v209 = vmul.f32 %v80, %v206
    %v210 = vmul.f32 %v81, %v206
    %214 = vrot.lane.b32.xlu0 %v208, 112
    %v215 = vpop.permute.xlu0 %214
    %216 = vrot.lane.b32.xlu0 %v209, 112
    %v217 = vpop.permute.xlu0 %216
    %218 = vrot.lane.b32.xlu0 %v210, 112
    %v219 = vpop.permute.xlu0 %218
    %v220 = vsel %vm70, %v215, %v217
    %v221 = vsel %vm70, %v217, %v219
    %v225 = vadd.f32 %v201, %v215
    %v226 = vadd.f32 %v202, %v220
    %v227 = vadd.f32 %v203, %v221
    %228 = vset.pattern.permute.xlu0 8
    %229 = vperm.xlu0 %228, %v42
    %v230 = vpop.permute.xlu0 %229
    %v232 = vmul.f32 %v79, %v230
    %v233 = vmul.f32 %v80, %v230
    %v234 = vmul.f32 %v81, %v230
    %238 = vrot.lane.b32.xlu0 %v232, 96
    %v239 = vpop.permute.xlu0 %238
    %240 = vrot.lane.b32.xlu0 %v233, 96
    %v241 = vpop.permute.xlu0 %240
    %242 = vrot.lane.b32.xlu0 %v234, 96
    %v243 = vpop.permute.xlu0 %242
    %v244 = vsel %vm98, %v239, %v241
    %v245 = vsel %vm98, %v241, %v243
    %v249 = vadd.f32 %v225, %v239
    %v250 = vadd.f32 %v226, %v244
    %v251 = vadd.f32 %v227, %v245
    %s252 = scalar_lea.vmem %s3, 2
    %v253 = vld [vmem:[%s252] ss:$4 sm:$0x3]
    %v255 = vlaneseq
    %v256 = vshrl.u32 %v255, 7
    %v257 = vsub.s32 0, %v256
    %v258 = vrot.slane %v253, %v257
    %v259 = vlaneseq
    %v260 = vshrl.u32 %v259, 7
    %v261 = vsub.s32 1, %v260
    %v262 = vrot.slane %v253, %v261
    %263 = vrot.lane.b32.xlu0 %v258, 113
    %v264 = vpop.permute.xlu0 %263
    %265 = vrot.lane.b32.xlu0 %v262, 113
    %v266 = vpop.permute.xlu0 %265
    %vm267 = vcmask 924672
    %v268 = vsel %vm267, %v264, %v266
    %v272 = vmul.f32 %v249, %v264
    %v273 = vmul.f32 %v250, %v268
    %v274 = vmul.f32 %v251, %v266
    %278 = vrot.lane.b32.xlu0 %v272, 126
    %v279 = vpop.permute.xlu0 %278
    %280 = vrot.lane.b32.xlu0 %v273, 126
    %v281 = vpop.permute.xlu0 %280
    %282 = vrot.lane.b32.xlu0 %v274, 126
    %v283 = vpop.permute.xlu0 %282
    %vm284 = vcmask 1031168
    %v285 = vsel %vm284, %v279, %v281
    %v286 = vsel %vm284, %v281, %v283
    %v290 = vadd.f32 %v194, %v285
    %v291 = vadd.f32 %v195, %v286
    %v292 = vadd.f32 %v196, %v283
    %v293 = vld [vmem:[%s2] sm:$0xff]
    %v294 = vlaneseq
    %v295 = vshrl.u32 %v294, 7
    %v296 = vsub.s32 0, %v295
    %v297 = vrot.slane %v290, %v296
    %v298 = vlaneseq
    %v299 = vshrl.u32 %v298, 7
    %v300 = vsub.s32 0, %v299
    %v301 = vrot.slane %v291, %v300
    %v302 = vlaneseq
    %v303 = vshrl.u32 %v302, 7
    %v304 = vsub.s32 0, %v303
    %v305 = vrot.slane %v292, %v304
    %307 = vset.pattern.permute.xlu0 0
    %308 = vperm.xlu0 %307, %v293
    %v309 = vpop.permute.xlu0 %308
    %v311 = vmul.f32 %v297, %v309
    %v312 = vmul.f32 %v301, %v309
    %v313 = vmul.f32 %v305, %v309
    %v314 = vlaneseq
    %v315 = vshrl.u32 %v314, 7
    %v316 = vsub.s32 1, %v315
    %v317 = vrot.slane %v290, %v316
    %v318 = vlaneseq
    %v319 = vshrl.u32 %v318, 7
    %v320 = vsub.s32 1, %v319
    %v321 = vrot.slane %v291, %v320
    %v322 = vlaneseq
    %v323 = vshrl.u32 %v322, 7
    %v324 = vsub.s32 1, %v323
    %v325 = vrot.slane %v292, %v324
    %326 = vset.pattern.permute.xlu0 1
    %327 = vperm.xlu0 %326, %v293
    %v328 = vpop.permute.xlu0 %327
    %v330 = vmul.f32 %v317, %v328
    %v331 = vmul.f32 %v321, %v328
    %v332 = vmul.f32 %v325, %v328
    %v333 = vadd.f32 %v311, %v330
    %v334 = vadd.f32 %v312, %v331
    %v335 = vadd.f32 %v313, %v332
    %v336 = vlaneseq
    %v337 = vshrl.u32 %v336, 7
    %v338 = vsub.s32 2, %v337
    %v339 = vrot.slane %v290, %v338
    %v340 = vlaneseq
    %v341 = vshrl.u32 %v340, 7
    %v342 = vsub.s32 2, %v341
    %v343 = vrot.slane %v291, %v342
    %v344 = vlaneseq
    %v345 = vshrl.u32 %v344, 7
    %v346 = vsub.s32 2, %v345
    %v347 = vrot.slane %v292, %v346
    %348 = vset.pattern.permute.xlu0 2
    %349 = vperm.xlu0 %348, %v293
    %v350 = vpop.permute.xlu0 %349
    %v352 = vmul.f32 %v339, %v350
    %v353 = vmul.f32 %v343, %v350
    %v354 = vmul.f32 %v347, %v350
    %v355 = vadd.f32 %v333, %v352
    %v356 = vadd.f32 %v334, %v353
    %v357 = vadd.f32 %v335, %v354
    %v358 = vlaneseq
    %v359 = vshrl.u32 %v358, 7
    %v360 = vsub.s32 3, %v359
    %v361 = vrot.slane %v290, %v360
    %v362 = vlaneseq
    %v363 = vshrl.u32 %v362, 7
    %v364 = vsub.s32 3, %v363
    %v365 = vrot.slane %v291, %v364
    %v366 = vlaneseq
    %v367 = vshrl.u32 %v366, 7
    %v368 = vsub.s32 3, %v367
    %v369 = vrot.slane %v292, %v368
    %370 = vset.pattern.permute.xlu0 3
    %371 = vperm.xlu0 %370, %v293
    %v372 = vpop.permute.xlu0 %371
    %v374 = vmul.f32 %v361, %v372
    %v375 = vmul.f32 %v365, %v372
    %v376 = vmul.f32 %v369, %v372
    %v377 = vadd.f32 %v355, %v374
    %v378 = vadd.f32 %v356, %v375
    %v379 = vadd.f32 %v357, %v376
    %383 = vrot.lane.b32.xlu0 %v377, 17
    %v384 = vpop.permute.xlu0 %383
    %385 = vrot.lane.b32.xlu0 %v378, 17
    %v386 = vpop.permute.xlu0 %385
    %387 = vrot.lane.b32.xlu0 %v379, 17
    %v388 = vpop.permute.xlu0 %387
    %vm389 = vcmask 138240
    %v390 = vsel %vm389, %v384, %v386
    %v391 = vsel %vm389, %v386, %v388
    %394 = vst [vmem:[#allocation6] sm:$0xff] %v390
    %395 = vst [vmem:[#allocation6 + $0x8] sm:$0xff] %v391
    %v396 = vlaneseq
    %v397 = vshrl.u32 %v396, 7
    %v398 = vsub.s32 4, %v397
    %v399 = vrot.slane %v290, %v398
    %v400 = vlaneseq
    %v401 = vshrl.u32 %v400, 7
    %v402 = vsub.s32 4, %v401
    %v403 = vrot.slane %v291, %v402
    %v404 = vlaneseq
    %v405 = vshrl.u32 %v404, 7
    %v406 = vsub.s32 4, %v405
    %v407 = vrot.slane %v292, %v406
    %v408 = vmul.f32 %v399, %v309
    %v409 = vmul.f32 %v403, %v309
    %v410 = vmul.f32 %v407, %v309
    %v411 = vlaneseq
    %v412 = vshrl.u32 %v411, 7
    %v413 = vsub.s32 5, %v412
    %v414 = vrot.slane %v290, %v413
    %v415 = vlaneseq
    %v416 = vshrl.u32 %v415, 7
    %v417 = vsub.s32 5, %v416
    %v418 = vrot.slane %v291, %v417
    %v419 = vlaneseq
    %v420 = vshrl.u32 %v419, 7
    %v421 = vsub.s32 5, %v420
    %v422 = vrot.slane %v292, %v421
    %v423 = vmul.f32 %v414, %v328
    %v424 = vmul.f32 %v418, %v328
    %v425 = vmul.f32 %v422, %v328
    %v426 = vadd.f32 %v408, %v423
    %v427 = vadd.f32 %v409, %v424
    %v428 = vadd.f32 %v410, %v425
    %v429 = vlaneseq
    %v430 = vshrl.u32 %v429, 7
    %v431 = vsub.s32 6, %v430
    %v432 = vrot.slane %v290, %v431
    %v433 = vlaneseq
    %v434 = vshrl.u32 %v433, 7
    %v435 = vsub.s32 6, %v434
    %v436 = vrot.slane %v291, %v435
    %v437 = vlaneseq
    %v438 = vshrl.u32 %v437, 7
    %v439 = vsub.s32 6, %v438
    %v440 = vrot.slane %v292, %v439
    %v441 = vmul.f32 %v432, %v350
    %v442 = vmul.f32 %v436, %v350
    %v443 = vmul.f32 %v440, %v350
    %v444 = vadd.f32 %v426, %v441
    %v445 = vadd.f32 %v427, %v442
    %v446 = vadd.f32 %v428, %v443
    %v447 = vlaneseq
    %v448 = vshrl.u32 %v447, 7
    %v449 = vsub.s32 7, %v448
    %v450 = vrot.slane %v290, %v449
    %v451 = vlaneseq
    %v452 = vshrl.u32 %v451, 7
    %v453 = vsub.s32 7, %v452
    %v454 = vrot.slane %v291, %v453
    %v455 = vlaneseq
    %v456 = vshrl.u32 %v455, 7
    %v457 = vsub.s32 7, %v456
    %v458 = vrot.slane %v292, %v457
    %v459 = vmul.f32 %v450, %v372
    %v460 = vmul.f32 %v454, %v372
    %v461 = vmul.f32 %v458, %v372
    %v462 = vadd.f32 %v444, %v459
    %v463 = vadd.f32 %v445, %v460
    %v464 = vadd.f32 %v446, %v461
    %468 = vrot.lane.b32.xlu0 %v462, 17
    %v469 = vpop.permute.xlu0 %468
    %470 = vrot.lane.b32.xlu0 %v463, 17
    %v471 = vpop.permute.xlu0 %470
    %472 = vrot.lane.b32.xlu0 %v464, 17
    %v473 = vpop.permute.xlu0 %472
    %v474 = vsel %vm389, %v469, %v471
    %v475 = vsel %vm389, %v471, %v473
    %478 = vst [vmem:[#allocation6 + $0x10] sm:$0xff] %v474
    %479 = vst [vmem:[#allocation6 + $0x18] sm:$0xff] %v475
    // Predicated region
    $region26: #{tpu_custom_call.1} parent=1 // pred_check
      _
    $region27: #{tpu_custom_call.1} parent=1 // pred_check_branch
      %481 = sbr.rel (0) target = $region29
    $region28: #{tpu_custom_call.1} parent=1 // pred_region
      %s483 = ssub.s32 512, 512
      %484 = vsyncadd [#allocation5], %s483
      %s485 = sshll.u32 [#allocation6], 4
      %s486 = int_to_ptr.vmem [resolvable:$true] %s485
      %491 = dma.vmem_to_hbm [thread:$0]  %s486, 512, %s4, [#allocation5], 256, 256, 16
    $region29: #{tpu_custom_call.1} parent=1 // pred_fallthru
      _
    // Predicated region
    $region30: #{tpu_custom_call.1} parent=1 // pred_check
      _
    $region31: #{tpu_custom_call.1} parent=1 // pred_check_branch
      %493 = sbr.rel (0) target = $region33
    $region32: #{tpu_custom_call.1} parent=1 // pred_region
      %494 = dma.done [#allocation5], 512
    $region33: #{tpu_custom_call.1} parent=1 // pred_fallthru
      _
    %495 = vsyncpa [#allocation4], 1
    %496 = vsyncpa [#allocation5], 1

</llo_original>
